<compile_context>
chip_gen: v7x
topology: tpu7x:2x2x1
jax: 0.10.0
libtpu: 0.0.40
codegen_flags: <defaults>
</compile_context>

<pallas_src>
import functools

import jax
import jax.numpy as jnp
from jax import lax
from jax.experimental import pallas as pl
from jax.experimental.pallas import tpu as pltpu

LAYERS = [100, 50, 1]
DROPOUT = 0.1            # identity in eval mode (inference semantics)
LANE = 128
MAX_TILE_K = 8192        # K (vectorizer) tile cap for the first matmul
MAX_TILE_B = 512         # batch tile cap (fewer w1 re-streams per batch)


def _round_up(n, m):
    return ((n + m - 1) // m) * m


@functools.lru_cache(maxsize=1)
def _vmem_budget_bytes():
    """Per-generation VMEM budget: ~75% of physical per-core VMEM.

    v5e/v6e (128 MiB) -> 96 MiB; v7x (64 MiB/TC) -> 48 MiB.  Falls back to the
    v7x-safe 48 MiB if the hardware query is unavailable.
    """
    cap = 64 << 20
    try:
        info = pltpu.get_tpu_info()
        cap = int(getattr(info, "vmem_capacity_bytes", cap)) or cap
    except Exception:
        pass
    return (cap // 4) * 3


def _feature_plan(V):
    """Return (Vp, tile_k, H1p, H2p).  tile_k == Vp  =>  w1 fully VMEM-resident."""
    H1p = _round_up(LAYERS[0], LANE)
    H2p = _round_up(LAYERS[1], LANE)
    budget = _vmem_budget_bytes()
    tb = MAX_TILE_B
    # Fixed/small VMEM users: small weights/biases (2x buffered), acc + h1/h2
    # temporaries, output tiles, plus headroom for Mosaic internal scratch.
    fixed = (2 * (H1p * H2p + H1p + 2 * H2p + LANE) * 4
             + 3 * tb * H1p * 4
             + 2 * tb * 4
             + (4 << 20))
    # Bytes per unit of K: double-buffered bf16 x tile + double-buffered bf16 w1 slice.
    per_k = 2 * tb * 2 + 2 * H1p * 2
    max_k = max(LANE, ((budget - fixed) // per_k) // LANE * LANE)
    Vp_full = _round_up(V, LANE)
    if Vp_full <= max_k:
        return Vp_full, Vp_full, H1p, H2p        # resident w1, no K axis
    tile_k = min(max_k, MAX_TILE_K)
    return _round_up(V, tile_k), tile_k, H1p, H2p


def _batch_plan(B):
    """Return (tile_b, Bp).  Multi-tile batches use 128-multiple tiles so the
    lane-dense (1, tile_b) output blocks satisfy the (8,128) constraint."""
    if B <= MAX_TILE_B:
        tile_b = _round_up(max(B, 1), 8)
        return tile_b, tile_b
    n_tiles = -(-B // MAX_TILE_B)
    tile_b = _round_up(-(-B // n_tiles), LANE)
    return tile_b, tile_b * n_tiles


def init_params(key, vectorizer_size):
    """Deterministic nn.Linear-style init: U(-1/sqrt(fan_in), 1/sqrt(fan_in))."""
    dims = [vectorizer_size] + LAYERS
    params = []
    for i in range(len(dims) - 1):
        fan_in, fan_out = dims[i], dims[i + 1]
        key, kw, kb = jax.random.split(key, 3)
        bound = 1.0 / jnp.sqrt(jnp.float32(fan_in))
        # store W as [in, out] so the kernel does x @ W (== x @ W_torch.T)
        w = jax.random.uniform(kw, (fan_in, fan_out), jnp.float32, -bound, bound)
        b = jax.random.uniform(kb, (fan_out,), jnp.float32, -bound, bound)
        params.append((w, b))
    return params


def prepare_params(params, compute_dtype=jnp.bfloat16):
    """One-time padding/casting of weights into TPU-friendly, (8,128)-aligned tiles.

    w1 (the only big weight) is cast to bf16 (half HBM traffic, bf16 MXU rate);
    everything else stays f32.  Zero padding keeps the numerics exact.
    """
    (w1, b1), (w2, b2), (w3, b3) = params
    V = w1.shape[0]
    Vp, _, H1p, H2p = _feature_plan(V)
    H1, H2, _ = LAYERS
    w1p = jnp.zeros((Vp, H1p), compute_dtype).at[:V, :H1].set(w1.astype(compute_dtype))
    b1p = jnp.zeros((1, H1p), jnp.float32).at[0, :H1].set(b1.astype(jnp.float32))
    w2p = jnp.zeros((H1p, H2p), jnp.float32).at[:H1, :H2].set(w2.astype(jnp.float32))
    b2p = jnp.zeros((1, H2p), jnp.float32).at[0, :H2].set(b2.astype(jnp.float32))
    # Final Linear(50, 1) stored as a row vector for the transposed-RHS matmul.
    w3p = jnp.zeros((1, H2p), jnp.float32).at[0, :H2].set(w3[:, 0].astype(jnp.float32))
    b3p = jnp.reshape(b3.astype(jnp.float32), (1, 1))
    return (w1p, b1p, w2p, b2p, w3p, b3p)


def _tail_layers(h1_pre, b1_ref, w2_ref, b2_ref, w3_ref, b3_ref, o_ref):
    """Layer-0 epilogue + layers 1/2 (tiny, f32) producing a lane-dense logit row."""
    h1 = jnp.maximum(h1_pre + b1_ref[...], 0.0)
    h2 = jnp.dot(h1, w2_ref[...], preferred_element_type=jnp.float32) + b2_ref[...]
    h2 = jnp.maximum(h2, 0.0)
    # Linear(50,1): (1,H2p) contracted with (tile_b,H2p) on the last dim
    # -> (1, tile_b) logits (MXU, transposed RHS) -> lane-dense output store.
    logit = lax.dot_general(w3_ref[...], h2, (((1,), (1,)), ((), ())),
                            preferred_element_type=jnp.float32) + b3_ref[0, 0]
    o_ref[...] = logit.astype(o_ref.dtype)


def mlp_kernel_resident(x_ref, w1_ref, b1_ref, w2_ref, b2_ref, w3_ref, b3_ref, o_ref):
    """w1 fully VMEM-resident; grid = (batch tiles,).  Single bf16 MXU pass."""
    acc = jnp.dot(x_ref[...], w1_ref[...], preferred_element_type=jnp.float32)
    _tail_layers(acc, b1_ref, w2_ref, b2_ref, w3_ref, b3_ref, o_ref)


def mlp_kernel_ktiled(x_ref, w1_ref, b1_ref, w2_ref, b2_ref, w3_ref, b3_ref, o_ref,
                      acc_ref):
    """K-tiled layer 0 with f32 accumulator; grid = (batch tiles, K tiles)."""
    k = pl.program_id(1)

    @pl.when(k == 0)
    def _init():
        acc_ref[...] = jnp.zeros_like(acc_ref)

    # bf16 x bf16 -> f32 accumulation on the MXU.
    acc_ref[...] += jnp.dot(x_ref[...], w1_ref[...], preferred_element_type=jnp.float32)

    @pl.when(k == pl.num_programs(1) - 1)
    def _finish():
        _tail_layers(acc_ref[...], b1_ref, w2_ref, b2_ref, w3_ref, b3_ref, o_ref)


@jax.jit
def network_forward(x, prepared):
    """x: [B, V].  prepared: prepare_params(...) output.  Returns logits [B]."""
    w1p, b1p, w2p, b2p, w3p, b3p = prepared
    B, V = x.shape
    Vp, tile_k, H1p, H2p = _feature_plan(V)
    if w1p.shape != (Vp, H1p):
        raise ValueError("prepared params do not match the input's vectorizer size")
    tile_b, Bp = _batch_plan(B)

    # inputs.float(); nn.Dropout(0.1) is identity in eval mode.
    # Stream x at bf16: halves HBM bytes on the only big tensor; the cast fuses
    # with the pad (single XLA op) when padding is needed at all.
    # TODO(synk): training-mode dropout (pltpu.prng_seed + stateful_bernoulli) not implemented.
    # TODO(synk): mask ragged B/V tails in-kernel so unaligned x is never re-materialized.
    x_bf = x.astype(jnp.bfloat16)
    if (B, V) != (Bp, Vp):
        x_bf = jnp.pad(x_bf, ((0, Bp - B), (0, Vp - V)))

    grid_b = Bp // tile_b
    grid_k = Vp // tile_k
    vmem_limit = int(_vmem_budget_bytes())   # 96 MiB v5e/v6e, 48 MiB v7x

    cost = pl.CostEstimate(
        flops=2 * B * (V * LAYERS[0] + LAYERS[0] * LAYERS[1] + LAYERS[1] * LAYERS[2]),
        transcendentals=0,
        bytes_accessed=int(
            x_bf.size * x_bf.dtype.itemsize
            + sum(int(p.size) * p.dtype.itemsize for p in prepared)
            + Bp * 4
        ),
    )

    def small_specs(idx_map):
        return [
            pl.BlockSpec((1, H1p), idx_map),                                   # b1
            pl.BlockSpec((H1p, H2p), idx_map),                                 # w2
            pl.BlockSpec((1, H2p), idx_map),                                   # b2
            pl.BlockSpec((1, H2p), idx_map),                                   # w3 row
            pl.BlockSpec((1, 1), idx_map,
                         memory_space=pltpu.MemorySpace.SMEM),                 # b3 scalar
        ]

    if grid_k == 1:
        # w1 fully resident: x is the only streamed tensor; no accumulator phases.
        grid_spec = pltpu.PrefetchScalarGridSpec(
            num_scalar_prefetch=0,
            grid=(grid_b,),
            in_specs=[pl.BlockSpec((tile_b, Vp), lambda i: (i, 0)),            # x tile
                      pl.BlockSpec((Vp, H1p), lambda i: (0, 0))]               # w1 resident
                     + small_specs(lambda i: (0, 0)),
            out_specs=pl.BlockSpec((1, tile_b), lambda i: (0, i)),             # lane-dense
        )
        kernel = mlp_kernel_resident
        dims = ("parallel",)
    else:
        # K-tiled path for very large vectorizer sizes (bounded VMEM).
        # TODO(synk): on v7x small-batch, split K across the two TensorCores
        # (pl.core_map / leading core axis) instead of the idle batch-parallel axis.
        grid_spec = pltpu.PrefetchScalarGridSpec(
            num_scalar_prefetch=0,
            grid=(grid_b, grid_k),
            in_specs=[pl.BlockSpec((tile_b, tile_k), lambda i, k: (i, k)),     # x tile
                      pl.BlockSpec((tile_k, H1p), lambda i, k: (k, 0))]        # w1 K-slice
                     + small_specs(lambda i, k: (0, 0)),
            out_specs=pl.BlockSpec((1, tile_b), lambda i, k: (0, i)),          # lane-dense
            scratch_shapes=[pltpu.VMEM((tile_b, H1p), jnp.float32)],
        )
        kernel = mlp_kernel_ktiled
        dims = ("parallel", "arbitrary")

    out = pl.pallas_call(
        kernel,
        out_shape=jax.ShapeDtypeStruct((1, Bp), jnp.float32),
        grid_spec=grid_spec,
        compiler_params=pltpu.CompilerParams(
            dimension_semantics=dims,
            vmem_limit_bytes=vmem_limit,
        ),
        cost_estimate=cost,
    )(x_bf, w1p, b1p, w2p, b2p, w3p, b3p)

    # row 0 holds the logits; [:B] == .squeeze(1) on the true batch
    return out[0, :B]


def _reference_forward_f32(x, params):
    """Pure-JAX, pure-f32 reference with the exact PyTorch forward semantics."""
    (w1, b1), (w2, b2), (w3, b3) = params
    h = x.astype(jnp.float32)
    h = jnp.maximum(h @ w1 + b1, 0.0)
    h = jnp.maximum(h @ w2 + b2, 0.0)
    return (h @ w3)[:, 0] + b3[0]


if __name__ == "__main__":
    key = jax.random.PRNGKey(0)
    k_in, k_param = jax.random.split(key)

    B = 8                   # small batch
    VECTORIZER_SIZE = 256   # small "vectorizer" feature dim

    x = jax.random.normal(k_in, (B, VECTORIZER_SIZE), jnp.float32)
    params = init_params(k_param, VECTORIZER_SIZE)
    prepared = prepare_params(params)          # one-time: pad + bf16-cast weights

    out = jax.block_until_ready(network_forward(x, prepared))
    ref = jax.block_until_ready(_reference_forward_f32(x, params))

    assert out.shape == (B,), out.shape
    # bf16 x/w1 streaming => not bitwise f32; tolerance sized for bf16 rounding.
    assert jnp.allclose(out, ref, atol=3e-2, rtol=3e-2), (out, ref)

    print("KERNEL_OK")
</pallas_src>

<mosaic_0001>
module attributes {stable_mosaic.version = 11 : i64} {
  func.func @mlp_kernel_resident(%arg0: i32, %arg1: memref<8x256xbf16, #tpu.memory_space<vmem>>, %arg2: memref<256x128xbf16, #tpu.memory_space<vmem>>, %arg3: memref<1x128xf32, #tpu.memory_space<vmem>>, %arg4: memref<128x128xf32, #tpu.memory_space<vmem>>, %arg5: memref<1x128xf32, #tpu.memory_space<vmem>>, %arg6: memref<1x128xf32, #tpu.memory_space<vmem>>, %arg7: memref<1x1xf32, #tpu.memory_space<smem>>, %arg8: memref<1x8xf32, #tpu.memory_space<vmem>>) attributes {dimension_semantics = [#tpu.dimension_semantics<parallel>], iteration_bounds = array<i64: 1>, scalar_prefetch = 0 : i64, scratch_operands = 0 : i64, tpu.core_type = #tpu.core_type<tc>, window_params = [{transform_indices = @transform_0, window_bounds = array<i64: 8, 256>}, {pipeline_mode = #tpu.pipeline_mode<synchronous>, transform_indices = @transform_1, window_bounds = array<i64: 256, 128>}, {pipeline_mode = #tpu.pipeline_mode<synchronous>, transform_indices = @transform_2, window_bounds = array<i64: 1, 128>}, {pipeline_mode = #tpu.pipeline_mode<synchronous>, transform_indices = @transform_3, window_bounds = array<i64: 128, 128>}, {pipeline_mode = #tpu.pipeline_mode<synchronous>, transform_indices = @transform_4, window_bounds = array<i64: 1, 128>}, {pipeline_mode = #tpu.pipeline_mode<synchronous>, transform_indices = @transform_5, window_bounds = array<i64: 1, 128>}, {transform_indices = @transform_6, window_bounds = array<i64: 1, 1>}, {transform_indices = @transform_7, window_bounds = array<i64: 1, 8>}]} {
    %c0 = arith.constant 0 : index
    %c0_0 = arith.constant 0 : index
    %0 = vector.load %arg1[%c0, %c0_0] : memref<8x256xbf16, #tpu.memory_space<vmem>>, vector<8x256xbf16>
    %c0_1 = arith.constant 0 : index
    %c0_2 = arith.constant 0 : index
    %1 = vector.load %arg2[%c0_1, %c0_2] : memref<256x128xbf16, #tpu.memory_space<vmem>>, vector<256x128xbf16>
    %cst = arith.constant dense<0.000000e+00> : vector<8x128xf32>
    %2 = tpu.matmul %0, %1, %cst {dimension_numbers = #tpu.dot_dimension_numbers<[1], [0], [0], [1], [0, 0, 1, 1], [], []>} : vector<8x256xbf16>, vector<256x128xbf16>, vector<8x128xf32> -> vector<8x128xf32>
    %c0_3 = arith.constant 0 : index
    %c0_4 = arith.constant 0 : index
    %3 = vector.load %arg3[%c0_3, %c0_4] : memref<1x128xf32, #tpu.memory_space<vmem>>, vector<1x128xf32>
    %4 = vector.broadcast %3 : vector<1x128xf32> to vector<8x128xf32>
    %5 = arith.addf %2, %4 : vector<8x128xf32>
    %cst_5 = arith.constant 0.000000e+00 : f32
    %6 = vector.broadcast %cst_5 : f32 to vector<8x128xf32>
    %7 = arith.maximumf %5, %6 : vector<8x128xf32>
    %c0_6 = arith.constant 0 : index
    %c0_7 = arith.constant 0 : index
    %8 = vector.load %arg4[%c0_6, %c0_7] : memref<128x128xf32, #tpu.memory_space<vmem>>, vector<128x128xf32>
    %cst_8 = arith.constant dense<0.000000e+00> : vector<8x128xf32>
    %9 = tpu.matmul %7, %8, %cst_8 {dimension_numbers = #tpu.dot_dimension_numbers<[1], [0], [0], [1], [0, 0, 1, 1], [], []>} : vector<8x128xf32>, vector<128x128xf32>, vector<8x128xf32> -> vector<8x128xf32>
    %c0_9 = arith.constant 0 : index
    %c0_10 = arith.constant 0 : index
    %10 = vector.load %arg5[%c0_9, %c0_10] : memref<1x128xf32, #tpu.memory_space<vmem>>, vector<1x128xf32>
    %11 = vector.broadcast %10 : vector<1x128xf32> to vector<8x128xf32>
    %12 = arith.addf %9, %11 : vector<8x128xf32>
    %cst_11 = arith.constant 0.000000e+00 : f32
    %13 = vector.broadcast %cst_11 : f32 to vector<8x128xf32>
    %14 = arith.maximumf %12, %13 : vector<8x128xf32>
    %c0_12 = arith.constant 0 : index
    %c0_13 = arith.constant 0 : index
    %15 = vector.load %arg6[%c0_12, %c0_13] : memref<1x128xf32, #tpu.memory_space<vmem>>, vector<1x128xf32>
    %cst_14 = arith.constant dense<0.000000e+00> : vector<1x8xf32>
    %16 = tpu.matmul %15, %14, %cst_14 {dimension_numbers = #tpu.dot_dimension_numbers<[1], [1], [0], [0], [0, 0, 1, 0], [], []>} : vector<1x128xf32>, vector<8x128xf32>, vector<1x8xf32> -> vector<1x8xf32>
    %c0_15 = arith.constant 0 : index
    %c0_16 = arith.constant 0 : index
    %17 = memref.load %arg7[%c0_15, %c0_16] : memref<1x1xf32, #tpu.memory_space<smem>>
    %18 = vector.broadcast %17 : f32 to vector<1x8xf32>
    %19 = arith.addf %16, %18 : vector<1x8xf32>
    %c0_17 = arith.constant 0 : index
    %c0_18 = arith.constant 0 : index
    %20 = vector.load %arg8[%c0_17, %c0_18] : memref<1x8xf32, #tpu.memory_space<vmem>>, vector<1x8xf32>
    tpu.vector_store %arg8[%c0_17, %c0_18], %19 {strides = array<i32>} : memref<1x8xf32, #tpu.memory_space<vmem>>, vector<1x8xf32>,
    return
  }
  func.func @transform_0(%arg0: i32) -> (i32, i32) {
    %c0_i32 = arith.constant 0 : i32
    %c0_i32_0 = arith.constant 0 : i32
    return %arg0, %c0_i32 : i32, i32
  }
  func.func @transform_1(%arg0: i32) -> (i32, i32) {
    %c0_i32 = arith.constant 0 : i32
    %c0_i32_0 = arith.constant 0 : i32
    %c0_i32_1 = arith.constant 0 : i32
    return %c0_i32, %c0_i32_0 : i32, i32
  }
  func.func @transform_2(%arg0: i32) -> (i32, i32) {
    %c0_i32 = arith.constant 0 : i32
    %c0_i32_0 = arith.constant 0 : i32
    %c0_i32_1 = arith.constant 0 : i32
    return %c0_i32, %c0_i32_0 : i32, i32
  }
  func.func @transform_3(%arg0: i32) -> (i32, i32) {
    %c0_i32 = arith.constant 0 : i32
    %c0_i32_0 = arith.constant 0 : i32
    %c0_i32_1 = arith.constant 0 : i32
    return %c0_i32, %c0_i32_0 : i32, i32
  }
  func.func @transform_4(%arg0: i32) -> (i32, i32) {
    %c0_i32 = arith.constant 0 : i32
    %c0_i32_0 = arith.constant 0 : i32
    %c0_i32_1 = arith.constant 0 : i32
    return %c0_i32, %c0_i32_0 : i32, i32
  }
  func.func @transform_5(%arg0: i32) -> (i32, i32) {
    %c0_i32 = arith.constant 0 : i32
    %c0_i32_0 = arith.constant 0 : i32
    %c0_i32_1 = arith.constant 0 : i32
    return %c0_i32, %c0_i32_0 : i32, i32
  }
  func.func @transform_6(%arg0: i32) -> (i32, i32) {
    %c0_i32 = arith.constant 0 : i32
    %c0_i32_0 = arith.constant 0 : i32
    %c0_i32_1 = arith.constant 0 : i32
    return %c0_i32, %c0_i32_0 : i32, i32
  }
  func.func @transform_7(%arg0: i32) -> (i32, i32) {
    %c0_i32 = arith.constant 0 : i32
    %c0_i32_0 = arith.constant 0 : i32
    return %c0_i32, %arg0 : i32, i32
  }
}

</mosaic_0001>

<llo_original>
// kernel: network_forward.1
$region0: #{network_forward.1}
  #allocation0 [shape = 'u32[]', space=smem, size = 0x4, offset = 0x4, fixed_abs, tag = 'smem constant byte address 0x4 - core index']
  #allocation1 [shape = 'u32[144,128]{1,0:T(1,128)}', space=vmem, size = 0x12000, scoped, tag = 'internal scratch']
  #allocation2 [shape = 'f32[1,1]{1,0:T(1,128)S(6)}', space=smem, size = 0x200, scoped, tag = 'scoped memory for network_forward.1']
  %s0 = inlined_call_operand.vmem [shape: bf16[8,256], index: 0, kind: input, shape index: {}]
  %s1 = inlined_call_operand.hbm [shape: bf16[256,128], index: 1, kind: input, shape index: {}]
  %s2 = inlined_call_operand.vmem [shape: f32[1,128], index: 2, kind: input, shape index: {}]
  %s3 = inlined_call_operand.hbm [shape: f32[128,128], index: 3, kind: input, shape index: {}]
  %s4 = inlined_call_operand.vmem [shape: f32[1,128], index: 4, kind: input, shape index: {}]
  %s5 = inlined_call_operand.vmem [shape: f32[1,128], index: 5, kind: input, shape index: {}]
  %s6 = inlined_call_operand.<no memory space> [shape: f32[1,1], index: 6, kind: input, shape index: {}]
  %s7 = inlined_call_operand.hbm [shape: f32[1,8], index: 7, kind: output, shape index: {}]
  %s8 = sld [smem:[#allocation0]]
  $region46: #{network_forward.1} parent=0
    _
  %s10 = ssub.s32 1, %s8
  %s11 = scalar_select 0, %s10, %s8
  %12 = sst [smem:[#allocation2]] %s6
  $region1: #{network_forward.1} parent=0
    #allocation3 [shape = 'u8[65536]{0}', space=vmem, size = 0x10000, scoped, tag = 'input window, operand 1, single buffered']
    #allocation4 [shape = 's32[1]{0}', space=sflag, size = 0x4, scoped, tag = 'scoped memory for network_forward.1']
    #allocation5 [shape = 's32[1]{0}', space=sflag, size = 0x4, scoped, tag = 'scoped memory for network_forward.1']
    #allocation6 [shape = 'u8[65536]{0}', space=vmem, size = 0x10000, scoped, tag = 'input window, operand 3, single buffered']
    #allocation7 [shape = 's32[1]{0}', space=sflag, size = 0x4, scoped, tag = 'scoped memory for network_forward.1']
    #allocation8 [shape = 'u8[512]{0}', space=vmem, size = 0x400, scoped, tag = 'output window, operand 0, single buffered']
    %13 = vsyncpa [#allocation4], 0
    %14 = vsyncpa [#allocation7], 0
    %15 = vsyncpa [#allocation5], 0
    // Predicated region
    $region2: #{network_forward.1} parent=1 // pred_check
      _
    $region3: #{network_forward.1} parent=1 // pred_check_branch
      %17 = sbr.rel (0) target = $region5
    $region4: #{network_forward.1} parent=1 // pred_region
      _
    $region5: #{network_forward.1} parent=1 // pred_fallthru
      _
    // Predicated region
    $region6: #{network_forward.1} parent=1 // pred_check
      _
    $region7: #{network_forward.1} parent=1 // pred_check_branch
      %19 = sbr.rel (0) target = $region9
    $region8: #{network_forward.1} parent=1 // pred_region
      %s21 = ssub.s32 2048, 2048
      %22 = vsyncadd [#allocation4], %s21
      %s23 = sshll.u32 [#allocation3], 4
      %s24 = int_to_ptr.vmem [resolvable:$true] %s23
      %29 = dma.hbm_to_vmem [thread:$0]  %s1, 2048, %s24, [#allocation4], 64, 64, 4
    $region9: #{network_forward.1} parent=1 // pred_fallthru
      _
    // Predicated region
    $region10: #{network_forward.1} parent=1 // pred_check
      _
    $region11: #{network_forward.1} parent=1 // pred_check_branch
      %31 = sbr.rel (0) target = $region13
    $region12: #{network_forward.1} parent=1 // pred_region
      _
    $region13: #{network_forward.1} parent=1 // pred_fallthru
      _
    // Predicated region
    $region14: #{network_forward.1} parent=1 // pred_check
      _
    $region15: #{network_forward.1} parent=1 // pred_check_branch
      %33 = sbr.rel (0) target = $region17
    $region16: #{network_forward.1} parent=1 // pred_region
      %s35 = ssub.s32 2048, 2048
      %36 = vsyncadd [#allocation7], %s35
      %s37 = sshll.u32 [#allocation6], 4
      %s38 = int_to_ptr.vmem [resolvable:$true] %s37
      %43 = dma.hbm_to_vmem [thread:$0]  %s3, 2048, %s38, [#allocation7], 128, 128, 8
    $region17: #{network_forward.1} parent=1 // pred_fallthru
      _
    // Predicated region
    $region18: #{network_forward.1} parent=1 // pred_check
      _
    $region19: #{network_forward.1} parent=1 // pred_check_branch
      %45 = sbr.rel (0) target = $region21
    $region20: #{network_forward.1} parent=1 // pred_region
      _
    $region21: #{network_forward.1} parent=1 // pred_fallthru
      _
    // Predicated region
    $region22: #{network_forward.1} parent=1 // pred_check
      _
    $region23: #{network_forward.1} parent=1 // pred_check_branch
      %47 = sbr.rel (0) target = $region25
    $region24: #{network_forward.1} parent=1 // pred_region
      _
    $region25: #{network_forward.1} parent=1 // pred_fallthru
      _
    // Predicated region
    $region26: #{network_forward.1} parent=1 // pred_check
      _
    $region27: #{network_forward.1} parent=1 // pred_check_branch
      %49 = sbr.rel (0) target = $region29
    $region28: #{network_forward.1} parent=1 // pred_region
      _
    $region29: #{network_forward.1} parent=1 // pred_fallthru
      _
    // Predicated region
    $region30: #{network_forward.1} parent=1 // pred_check
      _
    $region31: #{network_forward.1} parent=1 // pred_check_branch
      %51 = sbr.rel (0) target = $region33
    $region32: #{network_forward.1} parent=1 // pred_region
      %52 = dma.done [#allocation4], 2048
    $region33: #{network_forward.1} parent=1 // pred_fallthru
      _
    // Predicated region
    $region34: #{network_forward.1} parent=1 // pred_check
      _
    $region35: #{network_forward.1} parent=1 // pred_check_branch
      %54 = sbr.rel (0) target = $region37
    $region36: #{network_forward.1} parent=1 // pred_region
      %55 = dma.done [#allocation7], 2048
    $region37: #{network_forward.1} parent=1 // pred_fallthru
      _
    %v57 = vld [vmem:[%s0] sm:$0xff]
    %v58 = vld [vmem:[#allocation3] sm:$0xf]
    %v59 = vld [vmem:[#allocation3 + $0x4] sm:$0xf]
    %v60 = vld [vmem:[#allocation3 + $0x8] sm:$0xf]
    %v61 = vld [vmem:[#allocation3 + $0xc] sm:$0xf]
    %v62 = vld [vmem:[#allocation3 + $0x10] sm:$0xf]
    %v63 = vld [vmem:[#allocation3 + $0x14] sm:$0xf]
    %v64 = vld [vmem:[#allocation3 + $0x18] sm:$0xf]
    %v65 = vld [vmem:[#allocation3 + $0x1c] sm:$0xf]
    %v66 = vld [vmem:[#allocation3 + $0x20] sm:$0xf]
    %v67 = vld [vmem:[#allocation3 + $0x24] sm:$0xf]
    %v68 = vld [vmem:[#allocation3 + $0x28] sm:$0xf]
    %v69 = vld [vmem:[#allocation3 + $0x2c] sm:$0xf]
    %v70 = vld [vmem:[#allocation3 + $0x30] sm:$0xf]
    %v71 = vld [vmem:[#allocation3 + $0x34] sm:$0xf]
    %v72 = vld [vmem:[#allocation3 + $0x38] sm:$0xf]
    %v73 = vld [vmem:[#allocation3 + $0x3c] sm:$0xf]
    %v74 = vld [vmem:[#allocation3 + $0x40] sm:$0xf]
    %v75 = vld [vmem:[#allocation3 + $0x44] sm:$0xf]
    %v76 = vld [vmem:[#allocation3 + $0x48] sm:$0xf]
    %v77 = vld [vmem:[#allocation3 + $0x4c] sm:$0xf]
    %v78 = vld [vmem:[#allocation3 + $0x50] sm:$0xf]
    %v79 = vld [vmem:[#allocation3 + $0x54] sm:$0xf]
    %v80 = vld [vmem:[#allocation3 + $0x58] sm:$0xf]
    %v81 = vld [vmem:[#allocation3 + $0x5c] sm:$0xf]
    %v82 = vld [vmem:[#allocation3 + $0x60] sm:$0xf]
    %v83 = vld [vmem:[#allocation3 + $0x64] sm:$0xf]
    %v84 = vld [vmem:[#allocation3 + $0x68] sm:$0xf]
    %v85 = vld [vmem:[#allocation3 + $0x6c] sm:$0xf]
    %v86 = vld [vmem:[#allocation3 + $0x70] sm:$0xf]
    %v87 = vld [vmem:[#allocation3 + $0x74] sm:$0xf]
    %v88 = vld [vmem:[#allocation3 + $0x78] sm:$0xf]
    %v89 = vld [vmem:[#allocation3 + $0x7c] sm:$0xf]
    %v90 = vld [vmem:[%s2] sm:$0x1]
    %v92 = vlaneseq
    %v93 = vshrl.u32 %v92, 7
    %v94 = vsub.s32 0, %v93
    %v95 = vrot.slane %v90, %v94
    %v98 = vunpack.c.l.b16 %v57
    %v99 = vunpack.c.h.b16 %v57
    %v100 = vpack.c.b16 %v98, %v98
    %v101 = vpack.c.b16 %v99, %v99
    %v136 = vunpack.c.l.b16 %v58
    %v137 = vunpack.c.l.b16 %v59
    %v138 = vunpack.c.l.b16 %v60
    %v139 = vunpack.c.l.b16 %v61
    %v140 = vunpack.c.l.b16 %v62
    %v141 = vunpack.c.l.b16 %v63
    %v142 = vunpack.c.l.b16 %v64
    %v143 = vunpack.c.l.b16 %v65
    %v144 = vunpack.c.l.b16 %v66
    %v145 = vunpack.c.l.b16 %v67
    %v146 = vunpack.c.l.b16 %v68
    %v147 = vunpack.c.l.b16 %v69
    %v148 = vunpack.c.l.b16 %v70
    %v149 = vunpack.c.l.b16 %v71
    %v150 = vunpack.c.l.b16 %v72
    %v151 = vunpack.c.l.b16 %v73
    %v152 = vunpack.c.l.b16 %v74
    %v153 = vunpack.c.l.b16 %v75
    %v154 = vunpack.c.l.b16 %v76
    %v155 = vunpack.c.l.b16 %v77
    %v156 = vunpack.c.l.b16 %v78
    %v157 = vunpack.c.l.b16 %v79
    %v158 = vunpack.c.l.b16 %v80
    %v159 = vunpack.c.l.b16 %v81
    %v160 = vunpack.c.l.b16 %v82
    %v161 = vunpack.c.l.b16 %v83
    %v162 = vunpack.c.l.b16 %v84
    %v163 = vunpack.c.l.b16 %v85
    %v164 = vunpack.c.l.b16 %v86
    %v165 = vunpack.c.l.b16 %v87
    %v166 = vunpack.c.l.b16 %v88
    %v167 = vunpack.c.l.b16 %v89
    %v168 = vpack.c.b16 %v137, %v136
    %v169 = vpack.c.b16 %v139, %v138
    %v170 = vpack.c.b16 %v141, %v140
    %v171 = vpack.c.b16 %v143, %v142
    %v172 = vpack.c.b16 %v145, %v144
    %v173 = vpack.c.b16 %v147, %v146
    %v174 = vpack.c.b16 %v149, %v148
    %v175 = vpack.c.b16 %v151, %v150
    %v176 = vpack.c.b16 %v153, %v152
    %v177 = vpack.c.b16 %v155, %v154
    %v178 = vpack.c.b16 %v157, %v156
    %v179 = vpack.c.b16 %v159, %v158
    %v180 = vpack.c.b16 %v161, %v160
    %v181 = vpack.c.b16 %v163, %v162
    %v182 = vpack.c.b16 %v165, %v164
    %v183 = vpack.c.b16 %v167, %v166
    %200 = vmatprep.subr.bf16.mxu0 0
    %201 = vmatpush1.bf16.msra.mxu0 %v168
    %202 = vmatprep.subr.bf16.mxu0 0
    %203 = vmatpush1.bf16.msra.mxu0 %v169
    %204 = vmatprep.subr.bf16.mxu0 0
    %205 = vmatpush1.bf16.msra.mxu0 %v170
    %206 = vmatprep.subr.bf16.mxu0 0
    %207 = vmatpush1.bf16.msra.mxu0 %v171
    %208 = vmatprep.subr.bf16.mxu0 0
    %209 = vmatpush1.bf16.msra.mxu0 %v172
    %210 = vmatprep.subr.bf16.mxu0 0
    %211 = vmatpush1.bf16.msra.mxu0 %v173
    %212 = vmatprep.subr.bf16.mxu0 0
    %213 = vmatpush1.bf16.msra.mxu0 %v174
    %214 = vmatprep.subr.bf16.mxu0 0
    %215 = vmatpush1.bf16.msra.mxu0 %v175
    %216 = vmatprep.subr.bf16.mxu0 0
    %217 = vmatpush1.bf16.msra.mxu0 %v176
    %218 = vmatprep.subr.bf16.mxu0 0
    %219 = vmatpush1.bf16.msra.mxu0 %v177
    %220 = vmatprep.subr.bf16.mxu0 0
    %221 = vmatpush1.bf16.msra.mxu0 %v178
    %222 = vmatprep.subr.bf16.mxu0 0
    %223 = vmatpush1.bf16.msra.mxu0 %v179
    %224 = vmatprep.subr.bf16.mxu0 0
    %225 = vmatpush1.bf16.msra.mxu0 %v180
    %226 = vmatprep.subr.bf16.mxu0 0
    %227 = vmatpush1.bf16.msra.mxu0 %v181
    %228 = vmatprep.subr.bf16.mxu0 0
    %229 = vmatpush1.bf16.msra.mxu0 %v182
    %230 = vmatprep.subr.bf16.mxu0 0
    %231 = vmatpush1.bf16.msra.mxu0 %v183
    %232 = vmatprep.mubr.bf16.mxu0 %v101
    %233 = vmatmul.mubr.bf16.gmra.mrb[0].mxu0 %v100
    %v234 = vpop.f32.mrb[0].mxu0
    %v235 = vadd.f32 %v95, %v234
    %v236 = vpop.f32.mrb[0].mxu0
    %v237 = vpop.f32.mrb[0].mxu0
    %v238 = vpop.f32.mrb[0].mxu0
    %239 = vdwg.mxu0
    %v240 = vmax.f32 %v235, 0.0
    %v241 = vld [vmem:[#allocation6] sm:$0xff]
    %v242 = vld [vmem:[#allocation6 + $0x8] sm:$0xff]
    %v243 = vld [vmem:[#allocation6 + $0x10] sm:$0xff]
    %v244 = vld [vmem:[#allocation6 + $0x18] sm:$0xff]
    %v245 = vld [vmem:[#allocation6 + $0x20] sm:$0xff]
    %v246 = vld [vmem:[#allocation6 + $0x28] sm:$0xff]
    %v247 = vld [vmem:[#allocation6 + $0x30] sm:$0xff]
    %v248 = vld [vmem:[#allocation6 + $0x38] sm:$0xff]
    %v249 = vld [vmem:[#allocation6 + $0x40] sm:$0xff]
    %v250 = vld [vmem:[#allocation6 + $0x48] sm:$0xff]
    %v251 = vld [vmem:[#allocation6 + $0x50] sm:$0xff]
    %v252 = vld [vmem:[#allocation6 + $0x58] sm:$0xff]
    %v253 = vld [vmem:[#allocation6 + $0x60] sm:$0xff]
    %v254 = vld [vmem:[#allocation6 + $0x68] sm:$0xff]
    %v255 = vld [vmem:[#allocation6 + $0x70] sm:$0xff]
    %v256 = vld [vmem:[#allocation6 + $0x78] sm:$0xff]
    %v257 = vld [vmem:[%s4] sm:$0x1]
    %v259 = vlaneseq
    %v260 = vshrl.u32 %v259, 7
    %v261 = vsub.s32 0, %v260
    %v262 = vrot.slane %v257, %v261
    %264 = vmatprep.subr.mxu0 0.0
    %265 = vmatpush1.msra.mxu0 %v241
    %266 = vmatprep.subr.mxu0 0.0
    %267 = vmatpush1.msra.mxu0 %v242
    %268 = vmatprep.subr.mxu0 0.0
    %269 = vmatpush1.msra.mxu0 %v243
    %270 = vmatprep.subr.mxu0 0.0
    %271 = vmatpush1.msra.mxu0 %v244
    %272 = vmatprep.subr.mxu0 0.0
    %273 = vmatpush1.msra.mxu0 %v245
    %274 = vmatprep.subr.mxu0 0.0
    %275 = vmatpush1.msra.mxu0 %v246
    %276 = vmatprep.subr.mxu0 0.0
    %277 = vmatpush1.msra.mxu0 %v247
    %278 = vmatprep.subr.mxu0 0.0
    %279 = vmatpush1.msra.mxu0 %v248
    %280 = vmatprep.subr.mxu0 0.0
    %281 = vmatpush1.msra.mxu0 %v249
    %282 = vmatprep.subr.mxu0 0.0
    %283 = vmatpush1.msra.mxu0 %v250
    %284 = vmatprep.subr.mxu0 0.0
    %285 = vmatpush1.msra.mxu0 %v251
    %286 = vmatprep.subr.mxu0 0.0
    %287 = vmatpush1.msra.mxu0 %v252
    %288 = vmatprep.subr.mxu0 0.0
    %289 = vmatpush1.msra.mxu0 %v253
    %290 = vmatprep.subr.mxu0 0.0
    %291 = vmatpush1.msra.mxu0 %v254
    %292 = vmatprep.subr.mxu0 0.0
    %293 = vmatpush1.msra.mxu0 %v255
    %294 = vmatprep.subr.mxu0 0.0
    %295 = vmatpush1.msra.mxu0 %v256
    %296 = vmatprep.subr.mxu0 0.0
    %297 = vmatpush1.msra.mxu0 0.0
    %298 = vmatprep.subr.mxu0 0.0
    %299 = vmatpush1.msra.mxu0 0.0
    %300 = vmatprep.subr.mxu0 0.0
    %301 = vmatpush1.msra.mxu0 0.0
    %302 = vmatprep.subr.mxu0 0.0
    %303 = vmatpush1.msra.mxu0 0.0
    %304 = vmatprep.subr.mxu0 0.0
    %305 = vmatpush1.msra.mxu0 0.0
    %306 = vmatprep.subr.mxu0 0.0
    %307 = vmatpush1.msra.mxu0 0.0
    %308 = vmatprep.subr.mxu0 0.0
    %309 = vmatpush1.msra.mxu0 0.0
    %310 = vmatprep.subr.mxu0 0.0
    %311 = vmatpush1.msra.mxu0 0.0
    %312 = vmatprep.subr.mxu0 0.0
    %313 = vmatpush1.msra.mxu0 0.0
    %314 = vmatprep.subr.mxu0 0.0
    %315 = vmatpush1.msra.mxu0 0.0
    %316 = vmatprep.subr.mxu0 0.0
    %317 = vmatpush1.msra.mxu0 0.0
    %318 = vmatprep.subr.mxu0 0.0
    %319 = vmatpush1.msra.mxu0 0.0
    %320 = vmatprep.subr.mxu0 0.0
    %321 = vmatpush1.msra.mxu0 0.0
    %322 = vmatprep.subr.mxu0 0.0
    %323 = vmatpush1.msra.mxu0 0.0
    %324 = vmatprep.subr.mxu0 0.0
    %325 = vmatpush1.msra.mxu0 0.0
    %326 = vmatprep.subr.mxu0 0.0
    %327 = vmatpush1.msra.mxu0 0.0
    %328 = vmatprep.mubr.f32.mxu0 0.0
    %329 = vmatmul.mubr.f32.gmra.mrb[0].mxu0 %v240
    %v330 = vpop.f32.mrb[0].mxu0
    %v331 = vadd.f32 %v262, %v330
    %v332 = vpop.f32.mrb[0].mxu0
    %333 = vdwg.mxu0
    %v334 = vmax.f32 %v331, 0.0
    %v335 = vld [vmem:[%s5] sm:$0x1]
    %s336 = sld [smem:[#allocation2]]
    %v337 = vstv %s336
    %338 = vmatprep.subr.mxu0 0.0
    %339 = vmatpush1.xpose.msra.mxu0 %v334
    %340 = vmatprep.subr.mxu0 0.0
    %341 = vmatpush1.xpose.msra.mxu0 0.0
    %342 = vmatprep.subr.mxu0 0.0
    %343 = vmatpush1.xpose.msra.mxu0 0.0
    %344 = vmatprep.subr.mxu0 0.0
    %345 = vmatpush1.xpose.msra.mxu0 0.0
    %346 = vmatprep.subr.mxu0 0.0
    %347 = vmatpush1.xpose.msra.mxu0 0.0
    %348 = vmatprep.subr.mxu0 0.0
    %349 = vmatpush1.xpose.msra.mxu0 0.0
    %350 = vmatprep.subr.mxu0 0.0
    %351 = vmatpush1.xpose.msra.mxu0 0.0
    %352 = vmatprep.subr.mxu0 0.0
    %353 = vmatpush1.xpose.msra.mxu0 0.0
    %354 = vmatprep.subr.mxu0 0.0
    %355 = vmatpush1.xpose.msra.mxu0 0.0
    %356 = vmatprep.subr.mxu0 0.0
    %357 = vmatpush1.xpose.msra.mxu0 0.0
    %358 = vmatprep.subr.mxu0 0.0
    %359 = vmatpush1.xpose.msra.mxu0 0.0
    %360 = vmatprep.subr.mxu0 0.0
    %361 = vmatpush1.xpose.msra.mxu0 0.0
    %362 = vmatprep.subr.mxu0 0.0
    %363 = vmatpush1.xpose.msra.mxu0 0.0
    %364 = vmatprep.subr.mxu0 0.0
    %365 = vmatpush1.xpose.msra.mxu0 0.0
    %366 = vmatprep.subr.mxu0 0.0
    %367 = vmatpush1.xpose.msra.mxu0 0.0
    %368 = vmatprep.subr.mxu0 0.0
    %369 = vmatpush1.xpose.msra.mxu0 0.0
    %370 = vmatprep.subr.mxu0 0.0
    %371 = vmatpush1.xpose.msra.mxu0 0.0
    %372 = vmatprep.subr.mxu0 0.0
    %373 = vmatpush1.xpose.msra.mxu0 0.0
    %374 = vmatprep.subr.mxu0 0.0
    %375 = vmatpush1.xpose.msra.mxu0 0.0
    %376 = vmatprep.subr.mxu0 0.0
    %377 = vmatpush1.xpose.msra.mxu0 0.0
    %378 = vmatprep.subr.mxu0 0.0
    %379 = vmatpush1.xpose.msra.mxu0 0.0
    %380 = vmatprep.subr.mxu0 0.0
    %381 = vmatpush1.xpose.msra.mxu0 0.0
    %382 = vmatprep.subr.mxu0 0.0
    %383 = vmatpush1.xpose.msra.mxu0 0.0
    %384 = vmatprep.subr.mxu0 0.0
    %385 = vmatpush1.xpose.msra.mxu0 0.0
    %386 = vmatprep.subr.mxu0 0.0
    %387 = vmatpush1.xpose.msra.mxu0 0.0
    %388 = vmatprep.subr.mxu0 0.0
    %389 = vmatpush1.xpose.msra.mxu0 0.0
    %390 = vmatprep.subr.mxu0 0.0
    %391 = vmatpush1.xpose.msra.mxu0 0.0
    %392 = vmatprep.subr.mxu0 0.0
    %393 = vmatpush1.xpose.msra.mxu0 0.0
    %394 = vmatprep.subr.mxu0 0.0
    %395 = vmatpush1.xpose.msra.mxu0 0.0
    %396 = vmatprep.subr.mxu0 0.0
    %397 = vmatpush1.xpose.msra.mxu0 0.0
    %398 = vmatprep.subr.mxu0 0.0
    %399 = vmatpush1.xpose.msra.mxu0 0.0
    %400 = vmatprep.subr.mxu0 0.0
    %401 = vmatpush1.xpose.msra.mxu0 0.0
    %402 = vmatprep.mubr.f32.mxu0 0.0
    %403 = vmatmul.mubr.f32.gmra.mrb[0].mxu0 %v335
    %v404 = vpop.f32.mrb[0].mxu0
    %v405 = vadd.f32 %v337, %v404
    %v406 = vpop.f32.mrb[0].mxu0
    %407 = vdwg.mxu0
    %vm408 = vcmask 57344
    %409 = vst.msk [vmem:[#allocation8] sm:$0x1] %vm408, %v405
    // Predicated region
    $region38: #{network_forward.1} parent=1 // pred_check
      _
    $region39: #{network_forward.1} parent=1 // pred_check_branch
      %411 = sbr.rel (0) target = $region41
    $region40: #{network_forward.1} parent=1 // pred_region
      %s413 = ssub.s32 16, 16
      %414 = vsyncadd [#allocation5], %s413
      %s416 = sshll.u32 [#allocation8], 4
      %s417 = int_to_ptr.vmem [resolvable:$true] %s416
      %419 = dma.vmem_to_hbm [thread:$0]  %s417, 16, %s7, [#allocation5]
    $region41: #{network_forward.1} parent=1 // pred_fallthru
      _
    // Predicated region
    $region42: #{network_forward.1} parent=1 // pred_check
      _
    $region43: #{network_forward.1} parent=1 // pred_check_branch
      %421 = sbr.rel (0) target = $region45
    $region44: #{network_forward.1} parent=1 // pred_region
      %422 = dma.done [#allocation5], 16
    $region45: #{network_forward.1} parent=1 // pred_fallthru
      _
    %423 = vsyncpa [#allocation4], 1
    %424 = vsyncpa [#allocation7], 1
    %425 = vsyncpa [#allocation5], 1

</llo_original>
